<compile_context>
chip_gen: v6e
topology: v6e:2x2x1
jax: 0.10.0
libtpu: 0.0.40
codegen_flags: <defaults>
</compile_context>

<pallas_src>
import jax
import jax.numpy as jnp
from jax.experimental import pallas as pl
from jax.experimental.pallas import tpu as pltpu


def _value_net_kernel(x_ref, w1t_ref, b1_ref, w2t_ref, b2_ref, w3_ref, o_ref):
    # x_ref: (S, TB) in MXU dtype; activations stay (H, TB) — batch on the lane axis.
    h1 = jnp.dot(w1t_ref[...], x_ref[...],
                 preferred_element_type=jnp.float32)                 # (H, TB) f32
    h1 = jnp.maximum(h1 + b1_ref[...], 0.0)                          # (H,1) bias bcast, f32 VPU
    h2 = jnp.dot(w2t_ref[...], h1.astype(w2t_ref.dtype),
                 preferred_element_type=jnp.float32)                 # (H, TB) f32
    h2 = jnp.maximum(h2 + b2_ref[...], 0.0)
    # Final H -> 1 layer: per-lane multiply by w3 column + sublane reduce -> (1, TB) row.
    o_ref[...] = jnp.sum(h2 * w3_ref[...], axis=0, keepdims=True).astype(o_ref.dtype)


def _cdiv(a, b):
    return (a + b - 1) // b


def _num_tensorcores_per_chip():
    """Best-effort: chips whose TensorCores share a grid via 'parallel' semantics."""
    try:
        kind = jax.devices()[0].device_kind.lower()
    except Exception:
        return 1
    if any(tag in kind for tag in ("v7", "v4", "v5p", "v5 p")):
        return 2
    return 1


def value_network_forward(state, params, *, n_grid_steps=None, max_batch_tile=2048,
                          use_bf16_mxu=False):
    """state: (B, state_dim) f32. params: dict of w1,b1,w2,b2,w3,b3 (weights stored (in,out)).

    n_grid_steps: number of batch tiles (grid steps). Default: 1 on single-TC chips
      (v5e/v6e), 2 on 2-TC chips (v4/v5p/v7x), more only if B exceeds max_batch_tile
      per step. Tiles are 128-lane aligned (batch lives on the lane axis).
    use_bf16_mxu: cast state/w1/w2 to bf16 in the wrapper (f32 accumulation, f32
      bias/ReLU) — the win at these shapes is the halved state DMA, not MXU rate.
    """
    B, S = state.shape
    H = params["w1"].shape[1]

    # --- grid / tile selection: balanced, 128-lane-aligned batch tiles -------------
    n_lane_chunks = max(1, _cdiv(B, 128))
    if n_grid_steps is None:
        n_grid_steps = max(_num_tensorcores_per_chip(), _cdiv(B, max_batch_tile))
    n_grid_steps = max(1, min(n_grid_steps, n_lane_chunks))
    tile = _cdiv(n_lane_chunks, n_grid_steps) * 128
    Bp = tile * n_grid_steps

    mxu_dtype = jnp.bfloat16 if use_bf16_mxu else jnp.float32

    # --- operand prep (wrapper): pad batch, cast, transpose so batch is on lanes ---
    x = state
    if Bp != B:
        x = jnp.pad(x, ((0, Bp - B), (0, 0)))
    x_t = x.astype(mxu_dtype).T                                   # (S, Bp)

    w1t = params["w1"].T.astype(mxu_dtype)                        # (H, S)
    w2t = params["w2"].T.astype(mxu_dtype)                        # (H, H)
    b1c = params["b1"].reshape(H, 1).astype(jnp.float32)          # (H, 1)
    b2c = params["b2"].reshape(H, 1).astype(jnp.float32)          # (H, 1)
    w3c = params["w3"].reshape(H, 1).astype(jnp.float32)          # (H, 1)

    full = lambda shape: pl.BlockSpec(shape, lambda i: (0, 0))    # resident across steps

    out_row = pl.pallas_call(
        _value_net_kernel,
        out_shape=jax.ShapeDtypeStruct((1, Bp), jnp.float32),     # lane-dense output row
        grid_spec=pltpu.PrefetchScalarGridSpec(
            num_scalar_prefetch=0,
            grid=(n_grid_steps,),
            in_specs=[
                pl.BlockSpec((S, tile), lambda i: (0, i)),        # state tile (S, TB)
                full((H, S)),                                     # w1^T
                full((H, 1)),                                     # b1 column
                full((H, H)),                                     # w2^T
                full((H, 1)),                                     # b2 column
                full((H, 1)),                                     # w3 column
            ],
            out_specs=pl.BlockSpec((1, tile), lambda i: (0, i)),
        ),
        compiler_params=pltpu.CompilerParams(
            dimension_semantics=("parallel",),  # batch tiles shard across TCs on 2-TC chips
        ),
    )(x_t, w1t, b1c, w2t, b2c, w3c)

    # b3 folded in here (scalar add on (B,) is free in XLA); slice away padded lanes.
    b3 = params["b3"].astype(jnp.float32).reshape(())
    return (out_row[0, :B] + b3)[:, None]                         # (B, 1)


def init_params(key, state_dim, hidden_dim, init_w=0.003):
    """Synthetic init mirroring the PyTorch module's __init__ (weights stored (in,out))."""
    k1, k2, k3, k4, k5, k6 = jax.random.split(key, 6)
    bound1 = 1.0 / jnp.sqrt(state_dim)
    bound2 = 1.0 / jnp.sqrt(hidden_dim)
    return {
        "w1": jax.random.uniform(k1, (state_dim, hidden_dim), jnp.float32, -bound1, bound1),
        "b1": jax.random.uniform(k2, (hidden_dim,), jnp.float32, -bound1, bound1),
        "w2": jax.random.uniform(k3, (hidden_dim, hidden_dim), jnp.float32, -bound2, bound2),
        "b2": jax.random.uniform(k4, (hidden_dim,), jnp.float32, -bound2, bound2),
        "w3": jax.random.uniform(k5, (hidden_dim, 1), jnp.float32, -init_w, init_w),
        "b3": jax.random.uniform(k6, (1,), jnp.float32, -init_w, init_w),
    }


def _reference_forward(state, params):
    h1 = jnp.maximum(state @ params["w1"] + params["b1"], 0.0)
    h2 = jnp.maximum(h1 @ params["w2"] + params["b2"], 0.0)
    return h2 @ params["w3"] + params["b3"]


if __name__ == "__main__":
    key = jax.random.PRNGKey(0)
    k_params, k_state = jax.random.split(key)

    # SAC value MLP shapes; B=300 exercises lane padding and (when forced) a 2-step grid.
    B, STATE_DIM, HIDDEN_DIM = 300, 16, 32
    params = init_params(k_params, STATE_DIM, HIDDEN_DIM)
    state = jax.random.normal(k_state, (B, STATE_DIM), dtype=jnp.float32)

    v_ref = _reference_forward(state, params)

    # Auto grid (1 step on v5e/v6e, 2 balanced steps on 2-TC chips), f32 MXU path.
    v = jax.block_until_ready(value_network_forward(state, params))
    assert v.shape == (B, 1)
    assert jnp.allclose(v, v_ref, atol=1e-4, rtol=1e-4)

    # Forced 2-step grid (exercises the multi-tile / 'parallel' path on any chip).
    v2 = jax.block_until_ready(value_network_forward(state, params, n_grid_steps=2))
    assert v2.shape == (B, 1)
    assert jnp.allclose(v2, v_ref, atol=1e-4, rtol=1e-4)

    # bf16 MXU-operand path (f32 accumulation) — looser tolerance.
    v_bf16 = jax.block_until_ready(
        value_network_forward(state, params, use_bf16_mxu=True))
    assert v_bf16.shape == (B, 1)
    assert jnp.allclose(v_bf16, v_ref, atol=1e-2, rtol=1e-1)

    print("KERNEL_OK")
</pallas_src>

<mosaic_0001>
module attributes {stable_mosaic.version = 11 : i64} {
  func.func @_value_net_kernel(%arg0: i32, %arg1: memref<16x384xf32, #tpu.memory_space<vmem>>, %arg2: memref<32x16xf32, #tpu.memory_space<vmem>>, %arg3: memref<32x1xf32, #tpu.memory_space<vmem>>, %arg4: memref<32x32xf32, #tpu.memory_space<vmem>>, %arg5: memref<32x1xf32, #tpu.memory_space<vmem>>, %arg6: memref<32x1xf32, #tpu.memory_space<vmem>>, %arg7: memref<1x384xf32, #tpu.memory_space<vmem>>) attributes {dimension_semantics = [#tpu.dimension_semantics<parallel>], iteration_bounds = array<i64: 1>, scalar_prefetch = 0 : i64, scratch_operands = 0 : i64, tpu.core_type = #tpu.core_type<tc>, window_params = [{transform_indices = @transform_0, window_bounds = array<i64: 16, 384>}, {pipeline_mode = #tpu.pipeline_mode<synchronous>, transform_indices = @transform_1, window_bounds = array<i64: 32, 16>}, {pipeline_mode = #tpu.pipeline_mode<synchronous>, transform_indices = @transform_2, window_bounds = array<i64: 32, 1>}, {pipeline_mode = #tpu.pipeline_mode<synchronous>, transform_indices = @transform_3, window_bounds = array<i64: 32, 32>}, {pipeline_mode = #tpu.pipeline_mode<synchronous>, transform_indices = @transform_4, window_bounds = array<i64: 32, 1>}, {pipeline_mode = #tpu.pipeline_mode<synchronous>, transform_indices = @transform_5, window_bounds = array<i64: 32, 1>}, {transform_indices = @transform_6, window_bounds = array<i64: 1, 384>}]} {
    %c0 = arith.constant 0 : index
    %c0_0 = arith.constant 0 : index
    %0 = vector.load %arg2[%c0, %c0_0] : memref<32x16xf32, #tpu.memory_space<vmem>>, vector<32x16xf32>
    %c0_1 = arith.constant 0 : index
    %c0_2 = arith.constant 0 : index
    %1 = vector.load %arg1[%c0_1, %c0_2] : memref<16x384xf32, #tpu.memory_space<vmem>>, vector<16x384xf32>
    %cst = arith.constant dense<0.000000e+00> : vector<32x384xf32>
    %2 = tpu.matmul %0, %1, %cst {dimension_numbers = #tpu.dot_dimension_numbers<[1], [0], [0], [1], [0, 0, 1, 1], [], []>} : vector<32x16xf32>, vector<16x384xf32>, vector<32x384xf32> -> vector<32x384xf32>
    %c0_3 = arith.constant 0 : index
    %c0_4 = arith.constant 0 : index
    %3 = vector.load %arg3[%c0_3, %c0_4] : memref<32x1xf32, #tpu.memory_space<vmem>>, vector<32x1xf32>
    %4 = vector.broadcast %3 : vector<32x1xf32> to vector<32x384xf32>
    %5 = arith.addf %2, %4 : vector<32x384xf32>
    %cst_5 = arith.constant 0.000000e+00 : f32
    %6 = vector.broadcast %cst_5 : f32 to vector<32x384xf32>
    %7 = arith.maximumf %5, %6 : vector<32x384xf32>
    %c0_6 = arith.constant 0 : index
    %c0_7 = arith.constant 0 : index
    %8 = vector.load %arg4[%c0_6, %c0_7] : memref<32x32xf32, #tpu.memory_space<vmem>>, vector<32x32xf32>
    %cst_8 = arith.constant dense<0.000000e+00> : vector<32x384xf32>
    %9 = tpu.matmul %8, %7, %cst_8 {dimension_numbers = #tpu.dot_dimension_numbers<[1], [0], [0], [1], [0, 0, 1, 1], [], []>} : vector<32x32xf32>, vector<32x384xf32>, vector<32x384xf32> -> vector<32x384xf32>
    %c0_9 = arith.constant 0 : index
    %c0_10 = arith.constant 0 : index
    %10 = vector.load %arg5[%c0_9, %c0_10] : memref<32x1xf32, #tpu.memory_space<vmem>>, vector<32x1xf32>
    %11 = vector.broadcast %10 : vector<32x1xf32> to vector<32x384xf32>
    %12 = arith.addf %9, %11 : vector<32x384xf32>
    %cst_11 = arith.constant 0.000000e+00 : f32
    %13 = vector.broadcast %cst_11 : f32 to vector<32x384xf32>
    %14 = arith.maximumf %12, %13 : vector<32x384xf32>
    %c0_12 = arith.constant 0 : index
    %c0_13 = arith.constant 0 : index
    %15 = vector.load %arg6[%c0_12, %c0_13] : memref<32x1xf32, #tpu.memory_space<vmem>>, vector<32x1xf32>
    %16 = vector.broadcast %15 : vector<32x1xf32> to vector<32x384xf32>
    %17 = arith.mulf %14, %16 : vector<32x384xf32>
    %cst_14 = arith.constant dense<0.000000e+00> : vector<384xf32>
    %18 = vector.multi_reduction <add>, %17, %cst_14 [0] : vector<32x384xf32> to vector<384xf32>
    %19 = vector.shape_cast %18 : vector<384xf32> to vector<1x384xf32>
    %c0_15 = arith.constant 0 : index
    %c0_16 = arith.constant 0 : index
    %20 = vector.load %arg7[%c0_15, %c0_16] : memref<1x384xf32, #tpu.memory_space<vmem>>, vector<1x384xf32>
    tpu.vector_store %arg7[%c0_15, %c0_16], %19 {strides = array<i32>} : memref<1x384xf32, #tpu.memory_space<vmem>>, vector<1x384xf32>,
    return
  }
  func.func @transform_0(%arg0: i32) -> (i32, i32) {
    %c0_i32 = arith.constant 0 : i32
    %c0_i32_0 = arith.constant 0 : i32
    return %c0_i32, %arg0 : i32, i32
  }
  func.func @transform_1(%arg0: i32) -> (i32, i32) {
    %c0_i32 = arith.constant 0 : i32
    %c0_i32_0 = arith.constant 0 : i32
    %c0_i32_1 = arith.constant 0 : i32
    return %c0_i32, %c0_i32_0 : i32, i32
  }
  func.func @transform_2(%arg0: i32) -> (i32, i32) {
    %c0_i32 = arith.constant 0 : i32
    %c0_i32_0 = arith.constant 0 : i32
    %c0_i32_1 = arith.constant 0 : i32
    return %c0_i32, %c0_i32_0 : i32, i32
  }
  func.func @transform_3(%arg0: i32) -> (i32, i32) {
    %c0_i32 = arith.constant 0 : i32
    %c0_i32_0 = arith.constant 0 : i32
    %c0_i32_1 = arith.constant 0 : i32
    return %c0_i32, %c0_i32_0 : i32, i32
  }
  func.func @transform_4(%arg0: i32) -> (i32, i32) {
    %c0_i32 = arith.constant 0 : i32
    %c0_i32_0 = arith.constant 0 : i32
    %c0_i32_1 = arith.constant 0 : i32
    return %c0_i32, %c0_i32_0 : i32, i32
  }
  func.func @transform_5(%arg0: i32) -> (i32, i32) {
    %c0_i32 = arith.constant 0 : i32
    %c0_i32_0 = arith.constant 0 : i32
    %c0_i32_1 = arith.constant 0 : i32
    return %c0_i32, %c0_i32_0 : i32, i32
  }
  func.func @transform_6(%arg0: i32) -> (i32, i32) {
    %c0_i32 = arith.constant 0 : i32
    %c0_i32_0 = arith.constant 0 : i32
    return %c0_i32, %arg0 : i32, i32
  }
}

</mosaic_0001>

<llo_original>
// kernel: tpu_custom_call.1
$region0: #{tpu_custom_call.1}
  #allocation0 [shape = 'u32[]', space=smem, size = 0x4, offset = 0x4, fixed_abs, tag = 'smem constant byte address 0x4 - core index']
  #allocation1 [shape = 'u32[144,128]{1,0:T(1,128)}', space=vmem, size = 0x12000, scoped, tag = 'internal scratch']
  %s0 = inlined_call_operand.vmem [shape: f32[16,384], index: 0, kind: input, shape index: {}]
  %s1 = inlined_call_operand.vmem [shape: f32[32,16], index: 1, kind: input, shape index: {}]
  %s2 = inlined_call_operand.vmem [shape: f32[32,1], index: 2, kind: input, shape index: {}]
  %s3 = inlined_call_operand.vmem [shape: f32[32,32], index: 3, kind: input, shape index: {}]
  %s4 = inlined_call_operand.vmem [shape: f32[32,1], index: 4, kind: input, shape index: {}]
  %s5 = inlined_call_operand.vmem [shape: f32[32,1], index: 5, kind: input, shape index: {}]
  %s6 = inlined_call_operand.hbm [shape: f32[1,384], index: 6, kind: output, shape index: {}]
  %s7 = sld [smem:[#allocation0]]
  $region34: #{tpu_custom_call.1} parent=0
    _
  %s9 = ssub.s32 1, %s7
  %s10 = scalar_select 0, %s9, %s7
  $region1: #{tpu_custom_call.1} parent=0
    #allocation2 [shape = 'u8[1536]{0}', space=vmem, size = 0x800, scoped, tag = 'output window, operand 0, single buffered']
    #allocation3 [shape = 's32[1]{0}', space=sflag, size = 0x4, scoped, tag = 'scoped memory for tpu_custom_call.1']
    %11 = vsyncpa [#allocation3], 0
    // Predicated region
    $region2: #{tpu_custom_call.1} parent=1 // pred_check
      _
    $region3: #{tpu_custom_call.1} parent=1 // pred_check_branch
      %13 = sbr.rel (0) target = $region5
    $region4: #{tpu_custom_call.1} parent=1 // pred_region
      _
    $region5: #{tpu_custom_call.1} parent=1 // pred_fallthru
      _
    // Predicated region
    $region6: #{tpu_custom_call.1} parent=1 // pred_check
      _
    $region7: #{tpu_custom_call.1} parent=1 // pred_check_branch
      %15 = sbr.rel (0) target = $region9
    $region8: #{tpu_custom_call.1} parent=1 // pred_region
      _
    $region9: #{tpu_custom_call.1} parent=1 // pred_fallthru
      _
    // Predicated region
    $region10: #{tpu_custom_call.1} parent=1 // pred_check
      _
    $region11: #{tpu_custom_call.1} parent=1 // pred_check_branch
      %17 = sbr.rel (0) target = $region13
    $region12: #{tpu_custom_call.1} parent=1 // pred_region
      _
    $region13: #{tpu_custom_call.1} parent=1 // pred_fallthru
      _
    // Predicated region
    $region14: #{tpu_custom_call.1} parent=1 // pred_check
      _
    $region15: #{tpu_custom_call.1} parent=1 // pred_check_branch
      %19 = sbr.rel (0) target = $region17
    $region16: #{tpu_custom_call.1} parent=1 // pred_region
      _
    $region17: #{tpu_custom_call.1} parent=1 // pred_fallthru
      _
    // Predicated region
    $region18: #{tpu_custom_call.1} parent=1 // pred_check
      _
    $region19: #{tpu_custom_call.1} parent=1 // pred_check_branch
      %21 = sbr.rel (0) target = $region21
    $region20: #{tpu_custom_call.1} parent=1 // pred_region
      _
    $region21: #{tpu_custom_call.1} parent=1 // pred_fallthru
      _
    // Predicated region
    $region22: #{tpu_custom_call.1} parent=1 // pred_check
      _
    $region23: #{tpu_custom_call.1} parent=1 // pred_check_branch
      %23 = sbr.rel (0) target = $region25
    $region24: #{tpu_custom_call.1} parent=1 // pred_region
      _
    $region25: #{tpu_custom_call.1} parent=1 // pred_fallthru
      _
    %v24 = vld [vmem:[%s1] sm:$0xff]
    %v25 = vld [vmem:[%s1 + $0x8] sm:$0xff]
    %v26 = vld [vmem:[%s1 + $0x10] sm:$0xff]
    %v27 = vld [vmem:[%s1 + $0x18] sm:$0xff]
    %v28 = vld [vmem:[%s0] sm:$0xff]
    %v29 = vld [vmem:[%s0 + $0x8] sm:$0xff]
    %v30 = vld [vmem:[%s0 + $0x10] sm:$0xff]
    %v31 = vld [vmem:[%s0 + $0x18] sm:$0xff]
    %v32 = vld [vmem:[%s0 + $0x20] sm:$0xff]
    %v33 = vld [vmem:[%s0 + $0x28] sm:$0xff]
    %v34 = vld [vmem:[%s2] sm:$0xff]
    %v35 = vld [vmem:[%s2 + $0x8] sm:$0xff]
    %v36 = vld [vmem:[%s2 + $0x10] sm:$0xff]
    %v37 = vld [vmem:[%s2 + $0x18] sm:$0xff]
    %39 = vset.pattern.permute.xlu0 0
    %40 = vperm.xlu0 %39, %v34
    %v41 = vpop.permute.xlu0 %40
    %44 = vset.pattern.permute.xlu0 0
    %45 = vperm.xlu0 %44, %v35
    %v46 = vpop.permute.xlu0 %45
    %49 = vset.pattern.permute.xlu0 0
    %50 = vperm.xlu0 %49, %v36
    %v51 = vpop.permute.xlu0 %50
    %54 = vset.pattern.permute.xlu0 0
    %55 = vperm.xlu0 %54, %v37
    %v56 = vpop.permute.xlu0 %55
    %vm58 = vcmask 130048
    %v60 = vsel %vm58, %v24, 0
    %v63 = vsel %vm58, %v25, 0
    %v66 = vsel %vm58, %v26, 0
    %v69 = vsel %vm58, %v27, 0
    %71 = vmatprep.subr.mxu0 0.0
    %72 = vmatpush1.msra.mxu0 0.0
    %73 = vmatprep.subr.mxu0 0.0
    %74 = vmatpush1.msra.mxu0 0.0
    %75 = vmatprep.subr.mxu0 0.0
    %76 = vmatpush1.msra.mxu0 0.0
    %77 = vmatprep.subr.mxu0 0.0
    %78 = vmatpush1.msra.mxu0 0.0
    %79 = vmatprep.subr.mxu0 0.0
    %80 = vmatpush1.msra.mxu0 0.0
    %81 = vmatprep.subr.mxu0 0.0
    %82 = vmatpush1.msra.mxu0 0.0
    %83 = vmatprep.subr.mxu0 0.0
    %84 = vmatpush1.msra.mxu0 0.0
    %85 = vmatprep.subr.mxu0 0.0
    %86 = vmatpush1.msra.mxu0 0.0
    %87 = vmatprep.subr.mxu0 0.0
    %88 = vmatpush1.msra.mxu0 0.0
    %89 = vmatprep.subr.mxu0 0.0
    %90 = vmatpush1.msra.mxu0 0.0
    %91 = vmatprep.subr.mxu0 0.0
    %92 = vmatpush1.msra.mxu0 0.0
    %93 = vmatprep.subr.mxu0 0.0
    %94 = vmatpush1.msra.mxu0 0.0
    %95 = vmatprep.subr.mxu0 0.0
    %96 = vmatpush1.msra.mxu0 0.0
    %97 = vmatprep.subr.mxu0 0.0
    %98 = vmatpush1.msra.mxu0 0.0
    %99 = vmatprep.subr.mxu0 %v32
    %100 = vmatpush1.msra.mxu0 %v31
    %101 = vmatprep.subr.mxu0 %v29
    %102 = vmatpush1.msra.mxu0 %v28
    %103 = vmatprep.subr.mxu0 0.0
    %104 = vmatpush2.msra.mxu0 0.0
    %105 = vmatprep.subr.mxu0 0.0
    %106 = vmatpush2.msra.mxu0 0.0
    %107 = vmatprep.subr.mxu0 0.0
    %108 = vmatpush2.msra.mxu0 0.0
    %109 = vmatprep.subr.mxu0 0.0
    %110 = vmatpush2.msra.mxu0 0.0
    %111 = vmatprep.subr.mxu0 0.0
    %112 = vmatpush2.msra.mxu0 0.0
    %113 = vmatprep.subr.mxu0 0.0
    %114 = vmatpush2.msra.mxu0 0.0
    %115 = vmatprep.subr.mxu0 0.0
    %116 = vmatpush2.msra.mxu0 0.0
    %117 = vmatprep.subr.mxu0 0.0
    %118 = vmatpush2.msra.mxu0 0.0
    %119 = vmatprep.subr.mxu0 0.0
    %120 = vmatpush2.msra.mxu0 0.0
    %121 = vmatprep.subr.mxu0 0.0
    %122 = vmatpush2.msra.mxu0 0.0
    %123 = vmatprep.subr.mxu0 0.0
    %124 = vmatpush2.msra.mxu0 0.0
    %125 = vmatprep.subr.mxu0 0.0
    %126 = vmatpush2.msra.mxu0 0.0
    %127 = vmatprep.subr.mxu0 0.0
    %128 = vmatpush2.msra.mxu0 0.0
    %129 = vmatprep.subr.mxu0 0.0
    %130 = vmatpush2.msra.mxu0 0.0
    %131 = vmatprep.subr.mxu0 0.0
    %132 = vmatpush2.msra.mxu0 0.0
    %133 = vmatprep.subr.mxu0 0.0
    %134 = vmatpush2.msra.mxu0 0.0
    %135 = vmatprep.mubr.f32.mxu0 0.0
    %136 = vmatmul.mubr.f32.gmra.mxu0 %v60
    %v137 = vpop.f32.mrf.mxu0
    %v138 = vadd.f32 %v41, %v137
    %v139 = vpop.f32.mrf.mxu0
    %v140 = vadd.f32 %v41, %v139
    %141 = vmatprep.mubr.f32.mxu0 0.0
    %142 = vmatmul.mubr.f32.gmra.mxu0 %v63
    %v143 = vpop.f32.mrf.mxu0
    %v144 = vadd.f32 %v46, %v143
    %v145 = vpop.f32.mrf.mxu0
    %v146 = vadd.f32 %v46, %v145
    %147 = vmatprep.mubr.f32.mxu0 0.0
    %148 = vmatmul.mubr.f32.gmra.mxu0 %v66
    %v149 = vpop.f32.mrf.mxu0
    %v150 = vadd.f32 %v51, %v149
    %v151 = vpop.f32.mrf.mxu0
    %v152 = vadd.f32 %v51, %v151
    %153 = vmatprep.mubr.f32.mxu0 0.0
    %154 = vmatmul.mubr.f32.gmra.mxu0 %v69
    %v155 = vpop.f32.mrf.mxu0
    %v156 = vadd.f32 %v56, %v155
    %v157 = vpop.f32.mrf.mxu0
    %v158 = vadd.f32 %v56, %v157
    %159 = vdwg.mxu0
    %160 = vmatprep.subr.mxu0 0.0
    %161 = vmatpush1.msra.mxu0 0.0
    %162 = vmatprep.subr.mxu0 0.0
    %163 = vmatpush1.msra.mxu0 0.0
    %164 = vmatprep.subr.mxu0 0.0
    %165 = vmatpush1.msra.mxu0 0.0
    %166 = vmatprep.subr.mxu0 0.0
    %167 = vmatpush1.msra.mxu0 0.0
    %168 = vmatprep.subr.mxu0 0.0
    %169 = vmatpush1.msra.mxu0 0.0
    %170 = vmatprep.subr.mxu0 0.0
    %171 = vmatpush1.msra.mxu0 0.0
    %172 = vmatprep.subr.mxu0 0.0
    %173 = vmatpush1.msra.mxu0 0.0
    %174 = vmatprep.subr.mxu0 0.0
    %175 = vmatpush1.msra.mxu0 0.0
    %176 = vmatprep.subr.mxu0 0.0
    %177 = vmatpush1.msra.mxu0 0.0
    %178 = vmatprep.subr.mxu0 0.0
    %179 = vmatpush1.msra.mxu0 0.0
    %180 = vmatprep.subr.mxu0 0.0
    %181 = vmatpush1.msra.mxu0 0.0
    %182 = vmatprep.subr.mxu0 0.0
    %183 = vmatpush1.msra.mxu0 0.0
    %184 = vmatprep.subr.mxu0 0.0
    %185 = vmatpush1.msra.mxu0 0.0
    %186 = vmatprep.subr.mxu0 0.0
    %187 = vmatpush1.msra.mxu0 0.0
    %188 = vmatprep.subr.mxu0 0.0
    %189 = vmatpush1.msra.mxu0 %v33
    %190 = vmatprep.subr.mxu0 0.0
    %191 = vmatpush1.msra.mxu0 %v30
    %192 = vmatprep.subr.mxu0 0.0
    %193 = vmatpush2.msra.mxu0 0.0
    %194 = vmatprep.subr.mxu0 0.0
    %195 = vmatpush2.msra.mxu0 0.0
    %196 = vmatprep.subr.mxu0 0.0
    %197 = vmatpush2.msra.mxu0 0.0
    %198 = vmatprep.subr.mxu0 0.0
    %199 = vmatpush2.msra.mxu0 0.0
    %200 = vmatprep.subr.mxu0 0.0
    %201 = vmatpush2.msra.mxu0 0.0
    %202 = vmatprep.subr.mxu0 0.0
    %203 = vmatpush2.msra.mxu0 0.0
    %204 = vmatprep.subr.mxu0 0.0
    %205 = vmatpush2.msra.mxu0 0.0
    %206 = vmatprep.subr.mxu0 0.0
    %207 = vmatpush2.msra.mxu0 0.0
    %208 = vmatprep.subr.mxu0 0.0
    %209 = vmatpush2.msra.mxu0 0.0
    %210 = vmatprep.subr.mxu0 0.0
    %211 = vmatpush2.msra.mxu0 0.0
    %212 = vmatprep.subr.mxu0 0.0
    %213 = vmatpush2.msra.mxu0 0.0
    %214 = vmatprep.subr.mxu0 0.0
    %215 = vmatpush2.msra.mxu0 0.0
    %216 = vmatprep.subr.mxu0 0.0
    %217 = vmatpush2.msra.mxu0 0.0
    %218 = vmatprep.subr.mxu0 0.0
    %219 = vmatpush2.msra.mxu0 0.0
    %220 = vmatprep.subr.mxu0 0.0
    %221 = vmatpush2.msra.mxu0 0.0
    %222 = vmatprep.subr.mxu0 0.0
    %223 = vmatpush2.msra.mxu0 0.0
    %224 = vmatprep.mubr.f32.mxu0 0.0
    %225 = vmatmul.mubr.f32.gmra.mxu0 %v60
    %v226 = vpop.f32.mrf.mxu0
    %v227 = vadd.f32 %v41, %v226
    %v228 = vpop.f32.mrf.mxu0
    %229 = vmatprep.mubr.f32.mxu0 0.0
    %230 = vmatmul.mubr.f32.gmra.mxu0 %v63
    %v231 = vpop.f32.mrf.mxu0
    %v232 = vadd.f32 %v46, %v231
    %v233 = vpop.f32.mrf.mxu0
    %234 = vmatprep.mubr.f32.mxu0 0.0
    %235 = vmatmul.mubr.f32.gmra.mxu0 %v66
    %v236 = vpop.f32.mrf.mxu0
    %v237 = vadd.f32 %v51, %v236
    %v238 = vpop.f32.mrf.mxu0
    %239 = vmatprep.mubr.f32.mxu0 0.0
    %240 = vmatmul.mubr.f32.gmra.mxu0 %v69
    %v241 = vpop.f32.mrf.mxu0
    %v242 = vadd.f32 %v56, %v241
    %v243 = vpop.f32.mrf.mxu0
    %244 = vdwg.mxu0
    %v245 = vmax.f32 %v138, 0.0
    %v246 = vmax.f32 %v140, 0.0
    %v247 = vmax.f32 %v227, 0.0
    %v248 = vmax.f32 %v144, 0.0
    %v249 = vmax.f32 %v146, 0.0
    %v250 = vmax.f32 %v232, 0.0
    %v251 = vmax.f32 %v150, 0.0
    %v252 = vmax.f32 %v152, 0.0
    %v253 = vmax.f32 %v237, 0.0
    %v254 = vmax.f32 %v156, 0.0
    %v255 = vmax.f32 %v158, 0.0
    %v256 = vmax.f32 %v242, 0.0
    %v257 = vld [vmem:[%s3] sm:$0xff]
    %v258 = vld [vmem:[%s3 + $0x8] sm:$0xff]
    %v259 = vld [vmem:[%s3 + $0x10] sm:$0xff]
    %v260 = vld [vmem:[%s3 + $0x18] sm:$0xff]
    %v261 = vld [vmem:[%s4] sm:$0xff]
    %v262 = vld [vmem:[%s4 + $0x8] sm:$0xff]
    %v263 = vld [vmem:[%s4 + $0x10] sm:$0xff]
    %v264 = vld [vmem:[%s4 + $0x18] sm:$0xff]
    %266 = vset.pattern.permute.xlu0 0
    %267 = vperm.xlu0 %266, %v261
    %v268 = vpop.permute.xlu0 %267
    %271 = vset.pattern.permute.xlu0 0
    %272 = vperm.xlu0 %271, %v262
    %v273 = vpop.permute.xlu0 %272
    %276 = vset.pattern.permute.xlu0 0
    %277 = vperm.xlu0 %276, %v263
    %v278 = vpop.permute.xlu0 %277
    %281 = vset.pattern.permute.xlu0 0
    %282 = vperm.xlu0 %281, %v264
    %v283 = vpop.permute.xlu0 %282
    %vm285 = vcmask 261120
    %v287 = vsel %vm285, %v257, 0
    %v290 = vsel %vm285, %v258, 0
    %v293 = vsel %vm285, %v259, 0
    %v296 = vsel %vm285, %v260, 0
    %298 = vmatprep.subr.mxu0 0.0
    %299 = vmatpush1.msra.mxu0 0.0
    %300 = vmatprep.subr.mxu0 0.0
    %301 = vmatpush1.msra.mxu0 0.0
    %302 = vmatprep.subr.mxu0 0.0
    %303 = vmatpush1.msra.mxu0 0.0
    %304 = vmatprep.subr.mxu0 0.0
    %305 = vmatpush1.msra.mxu0 0.0
    %306 = vmatprep.subr.mxu0 0.0
    %307 = vmatpush1.msra.mxu0 0.0
    %308 = vmatprep.subr.mxu0 0.0
    %309 = vmatpush1.msra.mxu0 0.0
    %310 = vmatprep.subr.mxu0 0.0
    %311 = vmatpush1.msra.mxu0 0.0
    %312 = vmatprep.subr.mxu0 0.0
    %313 = vmatpush1.msra.mxu0 0.0
    %314 = vmatprep.subr.mxu0 0.0
    %315 = vmatpush1.msra.mxu0 0.0
    %316 = vmatprep.subr.mxu0 0.0
    %317 = vmatpush1.msra.mxu0 0.0
    %318 = vmatprep.subr.mxu0 0.0
    %319 = vmatpush1.msra.mxu0 0.0
    %320 = vmatprep.subr.mxu0 0.0
    %321 = vmatpush1.msra.mxu0 0.0
    %322 = vmatprep.subr.mxu0 %v255
    %323 = vmatpush1.msra.mxu0 %v254
    %324 = vmatprep.subr.mxu0 %v252
    %325 = vmatpush1.msra.mxu0 %v251
    %326 = vmatprep.subr.mxu0 %v249
    %327 = vmatpush1.msra.mxu0 %v248
    %328 = vmatprep.subr.mxu0 %v246
    %329 = vmatpush1.msra.mxu0 %v245
    %330 = vmatprep.subr.mxu0 0.0
    %331 = vmatpush2.msra.mxu0 0.0
    %332 = vmatprep.subr.mxu0 0.0
    %333 = vmatpush2.msra.mxu0 0.0
    %334 = vmatprep.subr.mxu0 0.0
    %335 = vmatpush2.msra.mxu0 0.0
    %336 = vmatprep.subr.mxu0 0.0
    %337 = vmatpush2.msra.mxu0 0.0
    %338 = vmatprep.subr.mxu0 0.0
    %339 = vmatpush2.msra.mxu0 0.0
    %340 = vmatprep.subr.mxu0 0.0
    %341 = vmatpush2.msra.mxu0 0.0
    %342 = vmatprep.subr.mxu0 0.0
    %343 = vmatpush2.msra.mxu0 0.0
    %344 = vmatprep.subr.mxu0 0.0
    %345 = vmatpush2.msra.mxu0 0.0
    %346 = vmatprep.subr.mxu0 0.0
    %347 = vmatpush2.msra.mxu0 0.0
    %348 = vmatprep.subr.mxu0 0.0
    %349 = vmatpush2.msra.mxu0 0.0
    %350 = vmatprep.subr.mxu0 0.0
    %351 = vmatpush2.msra.mxu0 0.0
    %352 = vmatprep.subr.mxu0 0.0
    %353 = vmatpush2.msra.mxu0 0.0
    %354 = vmatprep.subr.mxu0 0.0
    %355 = vmatpush2.msra.mxu0 0.0
    %356 = vmatprep.subr.mxu0 0.0
    %357 = vmatpush2.msra.mxu0 0.0
    %358 = vmatprep.subr.mxu0 0.0
    %359 = vmatpush2.msra.mxu0 0.0
    %360 = vmatprep.subr.mxu0 0.0
    %361 = vmatpush2.msra.mxu0 0.0
    %362 = vmatprep.mubr.f32.mxu0 0.0
    %363 = vmatmul.mubr.f32.gmra.mxu0 %v287
    %v364 = vpop.f32.mrf.mxu0
    %v365 = vadd.f32 %v268, %v364
    %v366 = vpop.f32.mrf.mxu0
    %v367 = vadd.f32 %v268, %v366
    %368 = vmatprep.mubr.f32.mxu0 0.0
    %369 = vmatmul.mubr.f32.gmra.mxu0 %v290
    %v370 = vpop.f32.mrf.mxu0
    %v371 = vadd.f32 %v273, %v370
    %v372 = vpop.f32.mrf.mxu0
    %v373 = vadd.f32 %v273, %v372
    %374 = vmatprep.mubr.f32.mxu0 0.0
    %375 = vmatmul.mubr.f32.gmra.mxu0 %v293
    %v376 = vpop.f32.mrf.mxu0
    %v377 = vadd.f32 %v278, %v376
    %v378 = vpop.f32.mrf.mxu0
    %v379 = vadd.f32 %v278, %v378
    %380 = vmatprep.mubr.f32.mxu0 0.0
    %381 = vmatmul.mubr.f32.gmra.mxu0 %v296
    %v382 = vpop.f32.mrf.mxu0
    %v383 = vadd.f32 %v283, %v382
    %v384 = vpop.f32.mrf.mxu0
    %v385 = vadd.f32 %v283, %v384
    %386 = vdwg.mxu0
    %387 = vmatprep.subr.mxu0 0.0
    %388 = vmatpush1.msra.mxu0 0.0
    %389 = vmatprep.subr.mxu0 0.0
    %390 = vmatpush1.msra.mxu0 0.0
    %391 = vmatprep.subr.mxu0 0.0
    %392 = vmatpush1.msra.mxu0 0.0
    %393 = vmatprep.subr.mxu0 0.0
    %394 = vmatpush1.msra.mxu0 0.0
    %395 = vmatprep.subr.mxu0 0.0
    %396 = vmatpush1.msra.mxu0 0.0
    %397 = vmatprep.subr.mxu0 0.0
    %398 = vmatpush1.msra.mxu0 0.0
    %399 = vmatprep.subr.mxu0 0.0
    %400 = vmatpush1.msra.mxu0 0.0
    %401 = vmatprep.subr.mxu0 0.0
    %402 = vmatpush1.msra.mxu0 0.0
    %403 = vmatprep.subr.mxu0 0.0
    %404 = vmatpush1.msra.mxu0 0.0
    %405 = vmatprep.subr.mxu0 0.0
    %406 = vmatpush1.msra.mxu0 0.0
    %407 = vmatprep.subr.mxu0 0.0
    %408 = vmatpush1.msra.mxu0 0.0
    %409 = vmatprep.subr.mxu0 0.0
    %410 = vmatpush1.msra.mxu0 0.0
    %411 = vmatprep.subr.mxu0 0.0
    %412 = vmatpush1.msra.mxu0 %v256
    %413 = vmatprep.subr.mxu0 0.0
    %414 = vmatpush1.msra.mxu0 %v253
    %415 = vmatprep.subr.mxu0 0.0
    %416 = vmatpush1.msra.mxu0 %v250
    %417 = vmatprep.subr.mxu0 0.0
    %418 = vmatpush1.msra.mxu0 %v247
    %419 = vmatprep.subr.mxu0 0.0
    %420 = vmatpush2.msra.mxu0 0.0
    %421 = vmatprep.subr.mxu0 0.0
    %422 = vmatpush2.msra.mxu0 0.0
    %423 = vmatprep.subr.mxu0 0.0
    %424 = vmatpush2.msra.mxu0 0.0
    %425 = vmatprep.subr.mxu0 0.0
    %426 = vmatpush2.msra.mxu0 0.0
    %427 = vmatprep.subr.mxu0 0.0
    %428 = vmatpush2.msra.mxu0 0.0
    %429 = vmatprep.subr.mxu0 0.0
    %430 = vmatpush2.msra.mxu0 0.0
    %431 = vmatprep.subr.mxu0 0.0
    %432 = vmatpush2.msra.mxu0 0.0
    %433 = vmatprep.subr.mxu0 0.0
    %434 = vmatpush2.msra.mxu0 0.0
    %435 = vmatprep.subr.mxu0 0.0
    %436 = vmatpush2.msra.mxu0 0.0
    %437 = vmatprep.subr.mxu0 0.0
    %438 = vmatpush2.msra.mxu0 0.0
    %439 = vmatprep.subr.mxu0 0.0
    %440 = vmatpush2.msra.mxu0 0.0
    %441 = vmatprep.subr.mxu0 0.0
    %442 = vmatpush2.msra.mxu0 0.0
    %443 = vmatprep.subr.mxu0 0.0
    %444 = vmatpush2.msra.mxu0 0.0
    %445 = vmatprep.subr.mxu0 0.0
    %446 = vmatpush2.msra.mxu0 0.0
    %447 = vmatprep.subr.mxu0 0.0
    %448 = vmatpush2.msra.mxu0 0.0
    %449 = vmatprep.subr.mxu0 0.0
    %450 = vmatpush2.msra.mxu0 0.0
    %451 = vmatprep.mubr.f32.mxu0 0.0
    %452 = vmatmul.mubr.f32.gmra.mxu0 %v287
    %v453 = vpop.f32.mrf.mxu0
    %v454 = vadd.f32 %v268, %v453
    %v455 = vpop.f32.mrf.mxu0
    %456 = vmatprep.mubr.f32.mxu0 0.0
    %457 = vmatmul.mubr.f32.gmra.mxu0 %v290
    %v458 = vpop.f32.mrf.mxu0
    %v459 = vadd.f32 %v273, %v458
    %v460 = vpop.f32.mrf.mxu0
    %461 = vmatprep.mubr.f32.mxu0 0.0
    %462 = vmatmul.mubr.f32.gmra.mxu0 %v293
    %v463 = vpop.f32.mrf.mxu0
    %v464 = vadd.f32 %v278, %v463
    %v465 = vpop.f32.mrf.mxu0
    %466 = vmatprep.mubr.f32.mxu0 0.0
    %467 = vmatmul.mubr.f32.gmra.mxu0 %v296
    %v468 = vpop.f32.mrf.mxu0
    %v469 = vadd.f32 %v283, %v468
    %v470 = vpop.f32.mrf.mxu0
    %471 = vdwg.mxu0
    %v472 = vmax.f32 %v365, 0.0
    %v473 = vmax.f32 %v367, 0.0
    %v474 = vmax.f32 %v454, 0.0
    %v475 = vmax.f32 %v371, 0.0
    %v476 = vmax.f32 %v373, 0.0
    %v477 = vmax.f32 %v459, 0.0
    %v478 = vmax.f32 %v377, 0.0
    %v479 = vmax.f32 %v379, 0.0
    %v480 = vmax.f32 %v464, 0.0
    %v481 = vmax.f32 %v383, 0.0
    %v482 = vmax.f32 %v385, 0.0
    %v483 = vmax.f32 %v469, 0.0
    %v484 = vld [vmem:[%s5] sm:$0xff]
    %v485 = vld [vmem:[%s5 + $0x8] sm:$0xff]
    %v486 = vld [vmem:[%s5 + $0x10] sm:$0xff]
    %v487 = vld [vmem:[%s5 + $0x18] sm:$0xff]
    %489 = vset.pattern.permute.xlu0 0
    %490 = vperm.xlu0 %489, %v484
    %v491 = vpop.permute.xlu0 %490
    %494 = vset.pattern.permute.xlu0 0
    %495 = vperm.xlu0 %494, %v485
    %v496 = vpop.permute.xlu0 %495
    %499 = vset.pattern.permute.xlu0 0
    %500 = vperm.xlu0 %499, %v486
    %v501 = vpop.permute.xlu0 %500
    %504 = vset.pattern.permute.xlu0 0
    %505 = vperm.xlu0 %504, %v487
    %v506 = vpop.permute.xlu0 %505
    %v508 = vmul.f32 %v472, %v491
    %v509 = vmul.f32 %v473, %v491
    %v510 = vmul.f32 %v474, %v491
    %v511 = vmul.f32 %v475, %v496
    %v512 = vmul.f32 %v476, %v496
    %v513 = vmul.f32 %v477, %v496
    %v514 = vmul.f32 %v478, %v501
    %v515 = vmul.f32 %v479, %v501
    %v516 = vmul.f32 %v480, %v501
    %v517 = vmul.f32 %v481, %v506
    %v518 = vmul.f32 %v482, %v506
    %v519 = vmul.f32 %v483, %v506
    %v520 = vadd.f32 %v508, %v511
    %v521 = vadd.f32 %v520, %v514
    %v522 = vadd.f32 %v521, %v517
    %v523 = vrot.slane %v522, 4
    %v524 = vadd.f32 %v522, %v523
    %v525 = vrot.slane %v524, 2
    %v526 = vadd.f32 %v524, %v525
    %v527 = vrot.slane %v526, 1
    %v528 = vadd.f32 %v526, %v527
    %v529 = vadd.f32 %v509, %v512
    %v530 = vadd.f32 %v529, %v515
    %v531 = vadd.f32 %v530, %v518
    %v532 = vrot.slane %v531, 4
    %v533 = vadd.f32 %v531, %v532
    %v534 = vrot.slane %v533, 2
    %v535 = vadd.f32 %v533, %v534
    %v536 = vrot.slane %v535, 1
    %v537 = vadd.f32 %v535, %v536
    %v538 = vadd.f32 %v510, %v513
    %v539 = vadd.f32 %v538, %v516
    %v540 = vadd.f32 %v539, %v519
    %v541 = vrot.slane %v540, 4
    %v542 = vadd.f32 %v540, %v541
    %v543 = vrot.slane %v542, 2
    %v544 = vadd.f32 %v542, %v543
    %v545 = vrot.slane %v544, 1
    %v546 = vadd.f32 %v544, %v545
    %v550 = vcombine.low %v528, %v537
    %v552 = vunpack.c.l.s4 1966171168
    %v553 = vunpack.c.0.s8 %v552
    %v554 = vlaneseq
    %v555 = vshrl.u32 %v554, 7
    %v556 = vsub.s32 %v553, %v555
    %v557 = vrot.slane %v550, %v556
    %v559 = vunpack.c.l.s4 1966171168
    %v560 = vunpack.c.0.s8 %v559
    %v561 = vlaneseq
    %v562 = vshrl.u32 %v561, 7
    %v563 = vsub.s32 %v560, %v562
    %v564 = vrot.slane %v546, %v563
    %v565 = vcombine.low %v557, %v564
    %v567 = vunpack.c.l.s4 1966171168
    %v568 = vunpack.c.0.s8 %v567
    %v569 = vlaneseq
    %v570 = vshrl.u32 %v569, 7
    %v571 = vsub.s32 %v568, %v570
    %v572 = vrot.slane %v565, %v571
    %v574 = vlaneseq
    %vm575 = vcmp.ge.s32.totalorder %v574, 0
    %vm576 = vcmp.lt.s32.totalorder %v574, 384
    %vm577 = vmand %vm575, %vm576
    %578 = vst.msk [vmem:[#allocation2] sm:$0x7] %vm577, %v572
    // Predicated region
    $region26: #{tpu_custom_call.1} parent=1 // pred_check
      _
    $region27: #{tpu_custom_call.1} parent=1 // pred_check_branch
      %580 = sbr.rel (0) target = $region29
    $region28: #{tpu_custom_call.1} parent=1 // pred_region
      %s582 = ssub.s32 48, 48
      %583 = vsyncadd [#allocation3], %s582
      %s585 = sshll.u32 [#allocation2], 4
      %s586 = int_to_ptr.vmem [resolvable:$true] %s585
      %588 = dma.vmem_to_hbm [thread:$0]  %s586, 48, %s6, [#allocation3]
    $region29: #{tpu_custom_call.1} parent=1 // pred_fallthru
      _
    // Predicated region
    $region30: #{tpu_custom_call.1} parent=1 // pred_check
      _
    $region31: #{tpu_custom_call.1} parent=1 // pred_check_branch
      %590 = sbr.rel (0) target = $region33
    $region32: #{tpu_custom_call.1} parent=1 // pred_region
      %591 = dma.done [#allocation3], 48
    $region33: #{tpu_custom_call.1} parent=1 // pred_fallthru
      _
    %592 = vsyncpa [#allocation3], 1

</llo_original>
